<compile_context>
chip_gen: v7x
topology: tpu7x:2x2x1
jax: 0.10.0
libtpu: 0.0.40
codegen_flags: <defaults>
</compile_context>

<pallas_src>
import jax
import jax.numpy as jnp
from jax.experimental import pallas as pl
from jax.experimental.pallas import tpu as pltpu


def _linear_kernel(x_ref, wt_ref, b_ref, o_ref, acc_ref):
    # x_ref: (tb, tk)  wt_ref: (tk, tn)  b_ref: (1, tn) f32
    # o_ref: (tb, tn)  acc_ref: (tb, tn) f32 scratch (resident across the K axis)
    @pl.when(pl.program_id(2) == 0)
    def _init():
        acc_ref[...] = jnp.zeros_like(acc_ref)

    acc_ref[...] += jnp.dot(
        x_ref[...], wt_ref[...], preferred_element_type=jnp.float32
    )

    @pl.when(pl.program_id(2) == pl.num_programs(2) - 1)
    def _finalize():
        # f32 bias add + cast (kept in f32 — v5e VPU has no bf16 elementwise).
        o_ref[...] = (acc_ref[...] + b_ref[...]).astype(o_ref.dtype)


def _round_up(a, m):
    return -(-a // m) * m


def _vmem_ceiling():
    """~75% of the physical per-core VMEM (generation-aware)."""
    try:
        cap = int(pltpu.get_tpu_info().vmem_capacity_bytes)
    except Exception:
        cap = 64 << 20  # v7x-safe fallback
    return cap * 3 // 4  # ~48 MiB on v7x, ~96 MiB on v5e/v6e


def _largest_divisor_tile(dim, max_tile, align):
    """Largest multiple of `align` <= max_tile that divides `dim`; else full dim."""
    if dim <= max_tile:
        return dim
    t = (max_tile // align) * align
    while t >= align:
        if dim % t == 0:
            return t
        t -= align
    return dim  # no aligned divisor found; keep full (see TODO on ragged tiles)


def _choose_tiles(B, d_in, num_class, itemsize, vmem_ceiling):
    # Sublane packing: 8 rows (f32), 16 (bf16), 32 (int8/fp8).
    sub = 8 * (4 // itemsize)

    # --- K / N tiling: keep W fully resident when it comfortably fits, else tile.
    w_bytes = d_in * num_class * itemsize
    if 2 * w_bytes <= vmem_ceiling // 3:  # 2x = worst-case double buffering of W
        tk, tn = d_in, num_class
    else:
        tk = _largest_divisor_tile(d_in, 2048, 128)
        tn = _largest_divisor_tile(num_class, 512, 128)

    # --- Batch tile: biggest tile whose pipelined x/out/acc buffers fit what's left.
    resident = 2 * tk * tn * itemsize + 2 * tn * 4 + (4 << 20)  # W + bias + slack
    budget = max(vmem_ceiling - resident, 2 << 20)
    per_row = 2 * tk * itemsize + 2 * tn * itemsize + tn * 4  # x + out (2x) + f32 acc
    tb = max(sub, min(2048, budget // per_row))
    tb = (tb // sub) * sub
    if B <= tb:
        tb = B
    # >= 2 batch tiles lets "parallel" batch axis use both TensorCores on v7x.
    if tb >= B and B > sub:
        half = _round_up((B + 1) // 2, sub)
        if half < B:
            tb = half
    return tb, tk, tn


def classifier2layer_forward(x, weight, bias, *, compute_dtype=None):
    """Pallas forward for Classifier2layer: x @ weight.T + bias (nn.Linear).

    Args:
      x:      [B, input_dim]
      weight: [num_class, input_dim]  (native PyTorch nn.Linear layout)
      bias:   [num_class]
      compute_dtype: optional lower-precision MXU dtype (e.g. jnp.bfloat16);
        the matmul still accumulates in f32 and the bias add / final cast stay
        in f32.  Output dtype matches x.dtype.
    Returns:
      [B, num_class] array with x's dtype.
    """
    B, d_in = x.shape
    num_class, d_in_w = weight.shape
    assert d_in_w == d_in and bias.shape == (num_class,)

    out_dtype = x.dtype
    cdt = jnp.dtype(compute_dtype) if compute_dtype is not None else jnp.dtype(x.dtype)
    itemsize = cdt.itemsize

    # Hoist the weight transpose out of the kernel: one-time XLA transpose in the
    # wrapper (negligible vs B*d_in of x traffic) -> no per-step XLU vxpose of W.
    x_c = x.astype(cdt)
    w_t = weight.astype(cdt).T                               # [d_in, num_class]
    b2 = bias.astype(jnp.float32).reshape(1, num_class)      # f32 epilogue add

    vmem_ceiling = _vmem_ceiling()
    tb, tk, tn = _choose_tiles(B, d_in, num_class, itemsize, vmem_ceiling)
    grid_b = pl.cdiv(B, tb)
    grid_n = pl.cdiv(num_class, tn)
    grid_k = pl.cdiv(d_in, tk)

    # Scoped-VMEM ceiling: pipelined x/out tiles + (worst-case double-buffered)
    # W/bias blocks + f32 accumulator + Mosaic internal slack, capped per-chip.
    est = (2 * tb * (tk + tn) * itemsize
           + 2 * tk * tn * itemsize
           + 2 * tn * 4
           + tb * tn * 4
           + (4 << 20))
    vmem_limit = int(min(max(est, 16 << 20), vmem_ceiling))

    w_const = (grid_n == 1 and grid_k == 1)   # W block index never changes
    b_const = (grid_n == 1)                   # bias block index never changes

    def call(single_buffer_resident):
        def spec(shape, imap, const):
            if single_buffer_resident and const:
                # Resident block: a single buffer halves its VMEM footprint
                # (double buffering buys nothing when the block never changes).
                return pl.BlockSpec(shape, imap, pipeline_mode=pl.Buffered(1))
            return pl.BlockSpec(shape, imap)

        return pl.pallas_call(
            _linear_kernel,
            out_shape=jax.ShapeDtypeStruct((B, num_class), out_dtype),
            grid=(grid_b, grid_n, grid_k),
            in_specs=[
                spec((tb, tk), lambda i, j, k: (i, k), False),    # x: batch/K tiled
                spec((tk, tn), lambda i, j, k: (k, j), w_const),  # W^T
                spec((1, tn), lambda i, j, k: (0, j), b_const),   # bias (f32)
            ],
            out_specs=pl.BlockSpec((tb, tn), lambda i, j, k: (i, j)),
            scratch_shapes=[pltpu.VMEM((tb, tn), jnp.float32)],
            compiler_params=pltpu.CompilerParams(
                dimension_semantics=("parallel", "parallel", "arbitrary"),
                vmem_limit_bytes=vmem_limit,
            ),
        )(x_c, w_t, b2)

    try:
        return call(True)
    except Exception:
        # pipeline_mode / pl.Buffered(1) not supported by this jax/Mosaic build;
        # fall back to default double buffering (correct, slightly more VMEM).
        return call(False)


if __name__ == "__main__":
    key = jax.random.PRNGKey(0)

    def make_case(k, B, input_dim, num_class):
        kx, kw, kb = jax.random.split(k, 3)
        bound = 1.0 / (input_dim ** 0.5)  # PyTorch nn.Linear default init range
        weight = jax.random.uniform(kw, (num_class, input_dim), jnp.float32,
                                    minval=-bound, maxval=bound)
        bias = jax.random.uniform(kb, (num_class,), jnp.float32,
                                  minval=-bound, maxval=bound)
        x = jax.random.normal(kx, (B, input_dim), jnp.float32)
        return x, weight, bias

    k1, k2 = jax.random.split(key)

    # 1) Tiny shape consistent with the module (single grid step).
    x, w, b = make_case(k1, B=2, input_dim=32, num_class=8)
    out = jax.block_until_ready(classifier2layer_forward(x, w, b))
    ref = x @ w.T + b
    assert out.shape == (2, 8)
    assert jnp.allclose(out, ref, atol=1e-5, rtol=1e-5)

    # 2) Batch-tiled f32 path (>= 2 batch tiles -> both v7x TensorCores).
    x2, w2, b2 = make_case(k2, B=1024, input_dim=256, num_class=8)
    out2 = jax.block_until_ready(classifier2layer_forward(x2, w2, b2))
    ref2 = x2 @ w2.T + b2
    assert out2.shape == (1024, 8)
    assert jnp.allclose(out2, ref2, atol=1e-4, rtol=1e-4)

    # 3) bf16 compute path (bf16 MXU inputs, f32 accumulation + f32 epilogue).
    out3 = jax.block_until_ready(
        classifier2layer_forward(x2, w2, b2, compute_dtype=jnp.bfloat16))
    xb = x2.astype(jnp.bfloat16).astype(jnp.float32)
    wb = w2.astype(jnp.bfloat16).astype(jnp.float32)
    ref3 = xb @ wb.T + b2
    assert out3.dtype == x2.dtype
    assert jnp.allclose(out3, ref3, atol=2e-2, rtol=2e-2)

    print("KERNEL_OK")
</pallas_src>

<mosaic_0001>
module attributes {stable_mosaic.version = 11 : i64} {
  func.func @_linear_kernel(%arg0: i32, %arg1: i32, %arg2: i32, %arg3: memref<2x32xf32, #tpu.memory_space<vmem>>, %arg4: memref<32x8xf32, #tpu.memory_space<vmem>>, %arg5: memref<1x8xf32, #tpu.memory_space<vmem>>, %arg6: memref<2x8xf32, #tpu.memory_space<vmem>>, %arg7: memref<2x8xf32, #tpu.memory_space<vmem>>) attributes {dimension_semantics = [#tpu.dimension_semantics<parallel>, #tpu.dimension_semantics<parallel>, #tpu.dimension_semantics<arbitrary>], iteration_bounds = array<i64: 1, 1, 1>, scalar_prefetch = 0 : i64, scratch_operands = 1 : i64, tpu.core_type = #tpu.core_type<tc>, window_params = [{transform_indices = @transform_0, window_bounds = array<i64: 2, 32>}, {pipeline_mode = #tpu.pipeline_mode<synchronous>, transform_indices = @transform_1, window_bounds = array<i64: 32, 8>}, {pipeline_mode = #tpu.pipeline_mode<synchronous>, transform_indices = @transform_2, window_bounds = array<i64: 1, 8>}, {transform_indices = @transform_3, window_bounds = array<i64: 2, 8>}]} {
    %c0_i32 = arith.constant 0 : i32
    %0 = arith.cmpi eq, %arg2, %c0_i32 : i32
    %1 = arith.extui %0 : i1 to i32
    %c0_i32_0 = arith.constant 0 : i32
    %2 = arith.cmpi ne, %1, %c0_i32_0 : i32
    scf.if %2 {
      %cst_10 = arith.constant 0.000000e+00 : f32
      %12 = vector.broadcast %cst_10 : f32 to vector<2x8xf32>
      %c0_11 = arith.constant 0 : index
      %c0_12 = arith.constant 0 : index
      %13 = vector.load %arg7[%c0_11, %c0_12] : memref<2x8xf32, #tpu.memory_space<vmem>>, vector<2x8xf32>
      tpu.vector_store %arg7[%c0_11, %c0_12], %12 {strides = array<i32>} : memref<2x8xf32, #tpu.memory_space<vmem>>, vector<2x8xf32>,
    } else {
    }
    %c0 = arith.constant 0 : index
    %c0_1 = arith.constant 0 : index
    %3 = vector.load %arg7[%c0, %c0_1] : memref<2x8xf32, #tpu.memory_space<vmem>>, vector<2x8xf32>
    %c0_2 = arith.constant 0 : index
    %c0_3 = arith.constant 0 : index
    %4 = vector.load %arg3[%c0_2, %c0_3] : memref<2x32xf32, #tpu.memory_space<vmem>>, vector<2x32xf32>
    %c0_4 = arith.constant 0 : index
    %c0_5 = arith.constant 0 : index
    %5 = vector.load %arg4[%c0_4, %c0_5] : memref<32x8xf32, #tpu.memory_space<vmem>>, vector<32x8xf32>
    %cst = arith.constant dense<0.000000e+00> : vector<2x8xf32>
    %6 = tpu.matmul %4, %5, %cst {dimension_numbers = #tpu.dot_dimension_numbers<[1], [0], [0], [1], [0, 0, 1, 1], [], []>} : vector<2x32xf32>, vector<32x8xf32>, vector<2x8xf32> -> vector<2x8xf32>
    %7 = arith.addf %3, %6 : vector<2x8xf32>
    %c0_6 = arith.constant 0 : index
    %c0_7 = arith.constant 0 : index
    %8 = vector.load %arg7[%c0_6, %c0_7] : memref<2x8xf32, #tpu.memory_space<vmem>>, vector<2x8xf32>
    tpu.vector_store %arg7[%c0_6, %c0_7], %7 {strides = array<i32>} : memref<2x8xf32, #tpu.memory_space<vmem>>, vector<2x8xf32>,
    %c0_i32_8 = arith.constant 0 : i32
    %9 = arith.cmpi eq, %arg2, %c0_i32_8 : i32
    %10 = arith.extui %9 : i1 to i32
    %c0_i32_9 = arith.constant 0 : i32
    %11 = arith.cmpi ne, %10, %c0_i32_9 : i32
    scf.if %11 {
      %c0_10 = arith.constant 0 : index
      %c0_11 = arith.constant 0 : index
      %12 = vector.load %arg7[%c0_10, %c0_11] : memref<2x8xf32, #tpu.memory_space<vmem>>, vector<2x8xf32>
      %c0_12 = arith.constant 0 : index
      %c0_13 = arith.constant 0 : index
      %13 = vector.load %arg5[%c0_12, %c0_13] : memref<1x8xf32, #tpu.memory_space<vmem>>, vector<1x8xf32>
      %14 = vector.broadcast %13 : vector<1x8xf32> to vector<2x8xf32>
      %15 = arith.addf %12, %14 : vector<2x8xf32>
      %c0_14 = arith.constant 0 : index
      %c0_15 = arith.constant 0 : index
      %16 = vector.load %arg6[%c0_14, %c0_15] : memref<2x8xf32, #tpu.memory_space<vmem>>, vector<2x8xf32>
      tpu.vector_store %arg6[%c0_14, %c0_15], %15 {strides = array<i32>} : memref<2x8xf32, #tpu.memory_space<vmem>>, vector<2x8xf32>,
    } else {
    }
    return
  }
  func.func @transform_0(%arg0: i32, %arg1: i32, %arg2: i32) -> (i32, i32) {
    %c0_i32 = arith.constant 0 : i32
    return %arg0, %arg2 : i32, i32
  }
  func.func @transform_1(%arg0: i32, %arg1: i32, %arg2: i32) -> (i32, i32) {
    %c0_i32 = arith.constant 0 : i32
    return %arg2, %arg1 : i32, i32
  }
  func.func @transform_2(%arg0: i32, %arg1: i32, %arg2: i32) -> (i32, i32) {
    %c0_i32 = arith.constant 0 : i32
    %c0_i32_0 = arith.constant 0 : i32
    return %c0_i32, %arg1 : i32, i32
  }
  func.func @transform_3(%arg0: i32, %arg1: i32, %arg2: i32) -> (i32, i32) {
    %c0_i32 = arith.constant 0 : i32
    return %arg0, %arg1 : i32, i32
  }
}

module attributes {stable_mosaic.version = 11 : i64} {
  func.func @_linear_kernel(%arg0: i32, %arg1: i32, %arg2: i32, %arg3: memref<2x32xf32, #tpu.memory_space<vmem>>, %arg4: memref<32x8xf32, #tpu.memory_space<vmem>>, %arg5: memref<1x8xf32, #tpu.memory_space<vmem>>, %arg6: memref<2x8xf32, #tpu.memory_space<vmem>>, %arg7: memref<2x8xf32, #tpu.memory_space<vmem>>) attributes {dimension_semantics = [#tpu.dimension_semantics<parallel>, #tpu.dimension_semantics<parallel>, #tpu.dimension_semantics<arbitrary>], iteration_bounds = array<i64: 1, 1, 1>, scalar_prefetch = 0 : i64, scratch_operands = 1 : i64, tpu.core_type = #tpu.core_type<tc>, window_params = [{transform_indices = @transform_0, window_bounds = array<i64: 2, 32>}, {transform_indices = @transform_1, window_bounds = array<i64: 32, 8>}, {transform_indices = @transform_2, window_bounds = array<i64: 1, 8>}, {transform_indices = @transform_3, window_bounds = array<i64: 2, 8>}]} {
    %c0_i32 = arith.constant 0 : i32
    %0 = arith.cmpi eq, %arg2, %c0_i32 : i32
    %1 = arith.extui %0 : i1 to i32
    %c0_i32_0 = arith.constant 0 : i32
    %2 = arith.cmpi ne, %1, %c0_i32_0 : i32
    scf.if %2 {
      %cst_10 = arith.constant 0.000000e+00 : f32
      %12 = vector.broadcast %cst_10 : f32 to vector<2x8xf32>
      %c0_11 = arith.constant 0 : index
      %c0_12 = arith.constant 0 : index
      %13 = vector.load %arg7[%c0_11, %c0_12] : memref<2x8xf32, #tpu.memory_space<vmem>>, vector<2x8xf32>
      tpu.vector_store %arg7[%c0_11, %c0_12], %12 {strides = array<i32>} : memref<2x8xf32, #tpu.memory_space<vmem>>, vector<2x8xf32>,
    } else {
    }
    %c0 = arith.constant 0 : index
    %c0_1 = arith.constant 0 : index
    %3 = vector.load %arg7[%c0, %c0_1] : memref<2x8xf32, #tpu.memory_space<vmem>>, vector<2x8xf32>
    %c0_2 = arith.constant 0 : index
    %c0_3 = arith.constant 0 : index
    %4 = vector.load %arg3[%c0_2, %c0_3] : memref<2x32xf32, #tpu.memory_space<vmem>>, vector<2x32xf32>
    %c0_4 = arith.constant 0 : index
    %c0_5 = arith.constant 0 : index
    %5 = vector.load %arg4[%c0_4, %c0_5] : memref<32x8xf32, #tpu.memory_space<vmem>>, vector<32x8xf32>
    %cst = arith.constant dense<0.000000e+00> : vector<2x8xf32>
    %6 = tpu.matmul %4, %5, %cst {dimension_numbers = #tpu.dot_dimension_numbers<[1], [0], [0], [1], [0, 0, 1, 1], [], []>} : vector<2x32xf32>, vector<32x8xf32>, vector<2x8xf32> -> vector<2x8xf32>
    %7 = arith.addf %3, %6 : vector<2x8xf32>
    %c0_6 = arith.constant 0 : index
    %c0_7 = arith.constant 0 : index
    %8 = vector.load %arg7[%c0_6, %c0_7] : memref<2x8xf32, #tpu.memory_space<vmem>>, vector<2x8xf32>
    tpu.vector_store %arg7[%c0_6, %c0_7], %7 {strides = array<i32>} : memref<2x8xf32, #tpu.memory_space<vmem>>, vector<2x8xf32>,
    %c0_i32_8 = arith.constant 0 : i32
    %9 = arith.cmpi eq, %arg2, %c0_i32_8 : i32
    %10 = arith.extui %9 : i1 to i32
    %c0_i32_9 = arith.constant 0 : i32
    %11 = arith.cmpi ne, %10, %c0_i32_9 : i32
    scf.if %11 {
      %c0_10 = arith.constant 0 : index
      %c0_11 = arith.constant 0 : index
      %12 = vector.load %arg7[%c0_10, %c0_11] : memref<2x8xf32, #tpu.memory_space<vmem>>, vector<2x8xf32>
      %c0_12 = arith.constant 0 : index
      %c0_13 = arith.constant 0 : index
      %13 = vector.load %arg5[%c0_12, %c0_13] : memref<1x8xf32, #tpu.memory_space<vmem>>, vector<1x8xf32>
      %14 = vector.broadcast %13 : vector<1x8xf32> to vector<2x8xf32>
      %15 = arith.addf %12, %14 : vector<2x8xf32>
      %c0_14 = arith.constant 0 : index
      %c0_15 = arith.constant 0 : index
      %16 = vector.load %arg6[%c0_14, %c0_15] : memref<2x8xf32, #tpu.memory_space<vmem>>, vector<2x8xf32>
      tpu.vector_store %arg6[%c0_14, %c0_15], %15 {strides = array<i32>} : memref<2x8xf32, #tpu.memory_space<vmem>>, vector<2x8xf32>,
    } else {
    }
    return
  }
  func.func @transform_0(%arg0: i32, %arg1: i32, %arg2: i32) -> (i32, i32) {
    %c0_i32 = arith.constant 0 : i32
    return %arg0, %arg2 : i32, i32
  }
  func.func @transform_1(%arg0: i32, %arg1: i32, %arg2: i32) -> (i32, i32) {
    %c0_i32 = arith.constant 0 : i32
    return %arg2, %arg1 : i32, i32
  }
  func.func @transform_2(%arg0: i32, %arg1: i32, %arg2: i32) -> (i32, i32) {
    %c0_i32 = arith.constant 0 : i32
    %c0_i32_0 = arith.constant 0 : i32
    return %c0_i32, %arg1 : i32, i32
  }
  func.func @transform_3(%arg0: i32, %arg1: i32, %arg2: i32) -> (i32, i32) {
    %c0_i32 = arith.constant 0 : i32
    return %arg0, %arg1 : i32, i32
  }
}

</mosaic_0001>

<llo_original>
// kernel: tpu_custom_call.1
$region0: #{tpu_custom_call.1}
  #allocation0 [shape = 'u32[]', space=smem, size = 0x4, offset = 0x4, fixed_abs, tag = 'smem constant byte address 0x4 - core index']
  #allocation1 [shape = 'u32[144,128]{1,0:T(1,128)}', space=vmem, size = 0x12000, scoped, tag = 'internal scratch']
  #allocation2 [shape = 'f32[2,8]{1,0:T(2,128)}', space=vmem, size = 0x400, scoped, tag = 'scratch operand']
  %s0 = inlined_call_operand.vmem [shape: f32[2,32], index: 0, kind: input, shape index: {}]
  %s1 = inlined_call_operand.vmem [shape: f32[32,8], index: 1, kind: input, shape index: {}]
  %s2 = inlined_call_operand.vmem [shape: f32[1,8], index: 2, kind: input, shape index: {}]
  %s3 = inlined_call_operand.hbm [shape: f32[2,8], index: 3, kind: output, shape index: {}]
  %s4 = sld [smem:[#allocation0]]
  $region30: #{tpu_custom_call.1} parent=0
    _
  %s6 = ssub.s32 1, %s4
  %s7 = scalar_select 0, %s6, %s4
  $region1: #{tpu_custom_call.1} parent=0
    #allocation3 [shape = 'u8[1024]{0}', space=vmem, size = 0x400, scoped, tag = 'output window, operand 0, single buffered']
    #allocation4 [shape = 's32[1]{0}', space=sflag, size = 0x4, scoped, tag = 'scoped memory for tpu_custom_call.1']
    %8 = vsyncpa [#allocation4], 0
    // Predicated region
    $region2: #{tpu_custom_call.1} parent=1 // pred_check
      _
    $region3: #{tpu_custom_call.1} parent=1 // pred_check_branch
      %10 = sbr.rel (0) target = $region5
    $region4: #{tpu_custom_call.1} parent=1 // pred_region
      _
    $region5: #{tpu_custom_call.1} parent=1 // pred_fallthru
      _
    // Predicated region
    $region6: #{tpu_custom_call.1} parent=1 // pred_check
      _
    $region7: #{tpu_custom_call.1} parent=1 // pred_check_branch
      %12 = sbr.rel (0) target = $region9
    $region8: #{tpu_custom_call.1} parent=1 // pred_region
      _
    $region9: #{tpu_custom_call.1} parent=1 // pred_fallthru
      _
    // Predicated region
    $region10: #{tpu_custom_call.1} parent=1 // pred_check
      _
    $region11: #{tpu_custom_call.1} parent=1 // pred_check_branch
      %14 = sbr.rel (0) target = $region13
    $region12: #{tpu_custom_call.1} parent=1 // pred_region
      _
    $region13: #{tpu_custom_call.1} parent=1 // pred_fallthru
      _
    %p15 = scmp.eq.s32.totalorder 0, 0
    // Predicated region
    $region14: #{tpu_custom_call.1} parent=1 // pred_check
      %p16 = pneg %p15
    $region15: #{tpu_custom_call.1} parent=1 // pred_check_branch
      %18 = sbr.rel (%p16) target = $region17
    $region16: #{tpu_custom_call.1} parent=1 // pred_region
      %vm19 = vcmask 58368
      %20 = vst.msk [vmem:[#allocation2] sm:$0x3] %vm19, 0.0
    $region17: #{tpu_custom_call.1} parent=1 // pred_fallthru
      _
    %v21 = vld [vmem:[#allocation2] sm:$0x3]
    %v22 = vld [vmem:[%s0] sm:$0x3]
    %v23 = vld [vmem:[%s1] sm:$0xff]
    %v24 = vld [vmem:[%s1 + $0x8] sm:$0xff]
    %v25 = vld [vmem:[%s1 + $0x10] sm:$0xff]
    %v26 = vld [vmem:[%s1 + $0x18] sm:$0xff]
    %vm27 = vcmask 261120
    %v29 = vsel %vm27, %v22, 0
    %31 = vmatprep.subr.mxu0 0.0
    %32 = vmatpush1.msra.mxu0 %v23
    %33 = vmatprep.subr.mxu0 0.0
    %34 = vmatpush1.msra.mxu0 %v24
    %35 = vmatprep.subr.mxu0 0.0
    %36 = vmatpush1.msra.mxu0 %v25
    %37 = vmatprep.subr.mxu0 0.0
    %38 = vmatpush1.msra.mxu0 %v26
    %39 = vmatprep.subr.mxu0 0.0
    %40 = vmatpush1.msra.mxu0 0.0
    %41 = vmatprep.subr.mxu0 0.0
    %42 = vmatpush1.msra.mxu0 0.0
    %43 = vmatprep.subr.mxu0 0.0
    %44 = vmatpush1.msra.mxu0 0.0
    %45 = vmatprep.subr.mxu0 0.0
    %46 = vmatpush1.msra.mxu0 0.0
    %47 = vmatprep.subr.mxu0 0.0
    %48 = vmatpush1.msra.mxu0 0.0
    %49 = vmatprep.subr.mxu0 0.0
    %50 = vmatpush1.msra.mxu0 0.0
    %51 = vmatprep.subr.mxu0 0.0
    %52 = vmatpush1.msra.mxu0 0.0
    %53 = vmatprep.subr.mxu0 0.0
    %54 = vmatpush1.msra.mxu0 0.0
    %55 = vmatprep.subr.mxu0 0.0
    %56 = vmatpush1.msra.mxu0 0.0
    %57 = vmatprep.subr.mxu0 0.0
    %58 = vmatpush1.msra.mxu0 0.0
    %59 = vmatprep.subr.mxu0 0.0
    %60 = vmatpush1.msra.mxu0 0.0
    %61 = vmatprep.subr.mxu0 0.0
    %62 = vmatpush1.msra.mxu0 0.0
    %63 = vmatprep.subr.mxu0 0.0
    %64 = vmatpush1.msra.mxu0 0.0
    %65 = vmatprep.subr.mxu0 0.0
    %66 = vmatpush1.msra.mxu0 0.0
    %67 = vmatprep.subr.mxu0 0.0
    %68 = vmatpush1.msra.mxu0 0.0
    %69 = vmatprep.subr.mxu0 0.0
    %70 = vmatpush1.msra.mxu0 0.0
    %71 = vmatprep.subr.mxu0 0.0
    %72 = vmatpush1.msra.mxu0 0.0
    %73 = vmatprep.subr.mxu0 0.0
    %74 = vmatpush1.msra.mxu0 0.0
    %75 = vmatprep.subr.mxu0 0.0
    %76 = vmatpush1.msra.mxu0 0.0
    %77 = vmatprep.subr.mxu0 0.0
    %78 = vmatpush1.msra.mxu0 0.0
    %79 = vmatprep.subr.mxu0 0.0
    %80 = vmatpush1.msra.mxu0 0.0
    %81 = vmatprep.subr.mxu0 0.0
    %82 = vmatpush1.msra.mxu0 0.0
    %83 = vmatprep.subr.mxu0 0.0
    %84 = vmatpush1.msra.mxu0 0.0
    %85 = vmatprep.subr.mxu0 0.0
    %86 = vmatpush1.msra.mxu0 0.0
    %87 = vmatprep.subr.mxu0 0.0
    %88 = vmatpush1.msra.mxu0 0.0
    %89 = vmatprep.subr.mxu0 0.0
    %90 = vmatpush1.msra.mxu0 0.0
    %91 = vmatprep.subr.mxu0 0.0
    %92 = vmatpush1.msra.mxu0 0.0
    %93 = vmatprep.subr.mxu0 0.0
    %94 = vmatpush1.msra.mxu0 0.0
    %95 = vmatprep.mubr.f32.mxu0 0.0
    %96 = vmatmul.mubr.f32.gmra.mrb[0].mxu0 %v29
    %v97 = vpop.f32.mrb[0].mxu0
    %v98 = vadd.f32 0.0, %v97
    %v99 = vpop.f32.mrb[0].mxu0
    %100 = vdwg.mxu0
    %v101 = vadd.f32 %v21, %v98
    %vm102 = vcmask 58368
    %103 = vst.msk [vmem:[#allocation2] sm:$0x3] %vm102, %v101
    // Predicated region
    $region18: #{tpu_custom_call.1} parent=1 // pred_check
      %p104 = pneg %p15
    $region19: #{tpu_custom_call.1} parent=1 // pred_check_branch
      %106 = sbr.rel (%p104) target = $region21
    $region20: #{tpu_custom_call.1} parent=1 // pred_region
      %v107 = vld [vmem:[#allocation2] sm:$0x3]
      %v108 = vld [vmem:[%s2] sm:$0x1]
      %v110 = vlaneseq
      %v111 = vshrl.u32 %v110, 7
      %v112 = vsub.s32 0, %v111
      %v113 = vrot.slane %v108, %v112
      %v115 = vadd.f32 %v107, %v113
      %116 = vst.msk [vmem:[#allocation3] sm:$0x3] %vm102, %v115
    $region21: #{tpu_custom_call.1} parent=1 // pred_fallthru
      _
    // Predicated region
    $region22: #{tpu_custom_call.1} parent=1 // pred_check
      _
    $region23: #{tpu_custom_call.1} parent=1 // pred_check_branch
      %118 = sbr.rel (0) target = $region25
    $region24: #{tpu_custom_call.1} parent=1 // pred_region
      %s120 = ssub.s32 32, 32
      %121 = vsyncadd [#allocation4], %s120
      %s123 = sshll.u32 [#allocation3], 4
      %s124 = int_to_ptr.vmem [resolvable:$true] %s123
      %126 = dma.vmem_to_hbm [thread:$0]  %s124, 32, %s3, [#allocation4]
    $region25: #{tpu_custom_call.1} parent=1 // pred_fallthru
      _
    // Predicated region
    $region26: #{tpu_custom_call.1} parent=1 // pred_check
      _
    $region27: #{tpu_custom_call.1} parent=1 // pred_check_branch
      %128 = sbr.rel (0) target = $region29
    $region28: #{tpu_custom_call.1} parent=1 // pred_region
      %129 = dma.done [#allocation4], 32
    $region29: #{tpu_custom_call.1} parent=1 // pred_fallthru
      _
    %130 = vsyncpa [#allocation4], 1

// kernel: tpu_custom_call.1
$region0: #{tpu_custom_call.1}
  #allocation0 [shape = 'u32[]', space=smem, size = 0x4, offset = 0x4, fixed_abs, tag = 'smem constant byte address 0x4 - core index']
  #allocation1 [shape = 'u32[144,128]{1,0:T(1,128)}', space=vmem, size = 0x12000, scoped, tag = 'internal scratch']
  #allocation2 [shape = 'f32[2,8]{1,0:T(2,128)}', space=vmem, size = 0x400, scoped, tag = 'scratch operand']
  %s0 = inlined_call_operand.vmem [shape: f32[2,32], index: 0, kind: input, shape index: {}]
  %s1 = inlined_call_operand.vmem [shape: f32[32,8], index: 1, kind: input, shape index: {}]
  %s2 = inlined_call_operand.vmem [shape: f32[1,8], index: 2, kind: input, shape index: {}]
  %s3 = inlined_call_operand.hbm [shape: f32[2,8], index: 3, kind: output, shape index: {}]
  %s4 = sld [smem:[#allocation0]]
  $region30: #{tpu_custom_call.1} parent=0
    _
  %s6 = ssub.s32 1, %s4
  %s7 = scalar_select 0, %s6, %s4
  $region1: #{tpu_custom_call.1} parent=0
    #allocation3 [shape = 'u8[1024]{0}', space=vmem, size = 0x400, scoped, tag = 'output window, operand 0, single buffered']
    #allocation4 [shape = 's32[1]{0}', space=sflag, size = 0x4, scoped, tag = 'scoped memory for tpu_custom_call.1']
    %8 = vsyncpa [#allocation4], 0
    // Predicated region
    $region2: #{tpu_custom_call.1} parent=1 // pred_check
      _
    $region3: #{tpu_custom_call.1} parent=1 // pred_check_branch
      %10 = sbr.rel (0) target = $region5
    $region4: #{tpu_custom_call.1} parent=1 // pred_region
      _
    $region5: #{tpu_custom_call.1} parent=1 // pred_fallthru
      _
    // Predicated region
    $region6: #{tpu_custom_call.1} parent=1 // pred_check
      _
    $region7: #{tpu_custom_call.1} parent=1 // pred_check_branch
      %12 = sbr.rel (0) target = $region9
    $region8: #{tpu_custom_call.1} parent=1 // pred_region
      _
    $region9: #{tpu_custom_call.1} parent=1 // pred_fallthru
      _
    // Predicated region
    $region10: #{tpu_custom_call.1} parent=1 // pred_check
      _
    $region11: #{tpu_custom_call.1} parent=1 // pred_check_branch
      %14 = sbr.rel (0) target = $region13
    $region12: #{tpu_custom_call.1} parent=1 // pred_region
      _
    $region13: #{tpu_custom_call.1} parent=1 // pred_fallthru
      _
    %p15 = scmp.eq.s32.totalorder 0, 0
    // Predicated region
    $region14: #{tpu_custom_call.1} parent=1 // pred_check
      %p16 = pneg %p15
    $region15: #{tpu_custom_call.1} parent=1 // pred_check_branch
      %18 = sbr.rel (%p16) target = $region17
    $region16: #{tpu_custom_call.1} parent=1 // pred_region
      %vm19 = vcmask 58368
      %20 = vst.msk [vmem:[#allocation2] sm:$0x3] %vm19, 0.0
    $region17: #{tpu_custom_call.1} parent=1 // pred_fallthru
      _
    %v21 = vld [vmem:[#allocation2] sm:$0x3]
    %v22 = vld [vmem:[%s0] sm:$0x3]
    %v23 = vld [vmem:[%s1] sm:$0xff]
    %v24 = vld [vmem:[%s1 + $0x8] sm:$0xff]
    %v25 = vld [vmem:[%s1 + $0x10] sm:$0xff]
    %v26 = vld [vmem:[%s1 + $0x18] sm:$0xff]
    %vm27 = vcmask 261120
    %v29 = vsel %vm27, %v22, 0
    %31 = vmatprep.subr.mxu0 0.0
    %32 = vmatpush1.msra.mxu0 %v23
    %33 = vmatprep.subr.mxu0 0.0
    %34 = vmatpush1.msra.mxu0 %v24
    %35 = vmatprep.subr.mxu0 0.0
    %36 = vmatpush1.msra.mxu0 %v25
    %37 = vmatprep.subr.mxu0 0.0
    %38 = vmatpush1.msra.mxu0 %v26
    %39 = vmatprep.subr.mxu0 0.0
    %40 = vmatpush1.msra.mxu0 0.0
    %41 = vmatprep.subr.mxu0 0.0
    %42 = vmatpush1.msra.mxu0 0.0
    %43 = vmatprep.subr.mxu0 0.0
    %44 = vmatpush1.msra.mxu0 0.0
    %45 = vmatprep.subr.mxu0 0.0
    %46 = vmatpush1.msra.mxu0 0.0
    %47 = vmatprep.subr.mxu0 0.0
    %48 = vmatpush1.msra.mxu0 0.0
    %49 = vmatprep.subr.mxu0 0.0
    %50 = vmatpush1.msra.mxu0 0.0
    %51 = vmatprep.subr.mxu0 0.0
    %52 = vmatpush1.msra.mxu0 0.0
    %53 = vmatprep.subr.mxu0 0.0
    %54 = vmatpush1.msra.mxu0 0.0
    %55 = vmatprep.subr.mxu0 0.0
    %56 = vmatpush1.msra.mxu0 0.0
    %57 = vmatprep.subr.mxu0 0.0
    %58 = vmatpush1.msra.mxu0 0.0
    %59 = vmatprep.subr.mxu0 0.0
    %60 = vmatpush1.msra.mxu0 0.0
    %61 = vmatprep.subr.mxu0 0.0
    %62 = vmatpush1.msra.mxu0 0.0
    %63 = vmatprep.subr.mxu0 0.0
    %64 = vmatpush1.msra.mxu0 0.0
    %65 = vmatprep.subr.mxu0 0.0
    %66 = vmatpush1.msra.mxu0 0.0
    %67 = vmatprep.subr.mxu0 0.0
    %68 = vmatpush1.msra.mxu0 0.0
    %69 = vmatprep.subr.mxu0 0.0
    %70 = vmatpush1.msra.mxu0 0.0
    %71 = vmatprep.subr.mxu0 0.0
    %72 = vmatpush1.msra.mxu0 0.0
    %73 = vmatprep.subr.mxu0 0.0
    %74 = vmatpush1.msra.mxu0 0.0
    %75 = vmatprep.subr.mxu0 0.0
    %76 = vmatpush1.msra.mxu0 0.0
    %77 = vmatprep.subr.mxu0 0.0
    %78 = vmatpush1.msra.mxu0 0.0
    %79 = vmatprep.subr.mxu0 0.0
    %80 = vmatpush1.msra.mxu0 0.0
    %81 = vmatprep.subr.mxu0 0.0
    %82 = vmatpush1.msra.mxu0 0.0
    %83 = vmatprep.subr.mxu0 0.0
    %84 = vmatpush1.msra.mxu0 0.0
    %85 = vmatprep.subr.mxu0 0.0
    %86 = vmatpush1.msra.mxu0 0.0
    %87 = vmatprep.subr.mxu0 0.0
    %88 = vmatpush1.msra.mxu0 0.0
    %89 = vmatprep.subr.mxu0 0.0
    %90 = vmatpush1.msra.mxu0 0.0
    %91 = vmatprep.subr.mxu0 0.0
    %92 = vmatpush1.msra.mxu0 0.0
    %93 = vmatprep.subr.mxu0 0.0
    %94 = vmatpush1.msra.mxu0 0.0
    %95 = vmatprep.mubr.f32.mxu0 0.0
    %96 = vmatmul.mubr.f32.gmra.mrb[0].mxu0 %v29
    %v97 = vpop.f32.mrb[0].mxu0
    %v98 = vadd.f32 0.0, %v97
    %v99 = vpop.f32.mrb[0].mxu0
    %100 = vdwg.mxu0
    %v101 = vadd.f32 %v21, %v98
    %vm102 = vcmask 58368
    %103 = vst.msk [vmem:[#allocation2] sm:$0x3] %vm102, %v101
    // Predicated region
    $region18: #{tpu_custom_call.1} parent=1 // pred_check
      %p104 = pneg %p15
    $region19: #{tpu_custom_call.1} parent=1 // pred_check_branch
      %106 = sbr.rel (%p104) target = $region21
    $region20: #{tpu_custom_call.1} parent=1 // pred_region
      %v107 = vld [vmem:[#allocation2] sm:$0x3]
      %v108 = vld [vmem:[%s2] sm:$0x1]
      %v110 = vlaneseq
      %v111 = vshrl.u32 %v110, 7
      %v112 = vsub.s32 0, %v111
      %v113 = vrot.slane %v108, %v112
      %v115 = vadd.f32 %v107, %v113
      %116 = vst.msk [vmem:[#allocation3] sm:$0x3] %vm102, %v115
    $region21: #{tpu_custom_call.1} parent=1 // pred_fallthru
      _
    // Predicated region
    $region22: #{tpu_custom_call.1} parent=1 // pred_check
      _
    $region23: #{tpu_custom_call.1} parent=1 // pred_check_branch
      %118 = sbr.rel (0) target = $region25
    $region24: #{tpu_custom_call.1} parent=1 // pred_region
      %s120 = ssub.s32 32, 32
      %121 = vsyncadd [#allocation4], %s120
      %s123 = sshll.u32 [#allocation3], 4
      %s124 = int_to_ptr.vmem [resolvable:$true] %s123
      %126 = dma.vmem_to_hbm [thread:$0]  %s124, 32, %s3, [#allocation4]
    $region25: #{tpu_custom_call.1} parent=1 // pred_fallthru
      _
    // Predicated region
    $region26: #{tpu_custom_call.1} parent=1 // pred_check
      _
    $region27: #{tpu_custom_call.1} parent=1 // pred_check_branch
      %128 = sbr.rel (0) target = $region29
    $region28: #{tpu_custom_call.1} parent=1 // pred_region
      %129 = dma.done [#allocation4], 32
    $region29: #{tpu_custom_call.1} parent=1 // pred_fallthru
      _
    %130 = vsyncpa [#allocation4], 1

</llo_original>
